<compile_context>
chip_gen: v6e
topology: v6e:2x2x1
jax: 0.10.0
libtpu: 0.0.40
codegen_flags: <defaults>
</compile_context>

<pallas_src>
import functools

import jax
import jax.numpy as jnp
from jax.experimental import pallas as pl
from jax.experimental.pallas import tpu as pltpu

IMG_H = 32  # small stand-in for cfg.CONST.IMG_H (=224); must be divisible by 32
IMG_W = 32

VGG16_CFG = [64, 64, "M", 128, 128, "M", 256, 256, 256, "M",
             512, 512, 512, "M", 512, 512, 512, "M"]

_BF16_SUBLANE = 16  # native bf16 tile is (16, 128): pad W to a multiple of 16


def _round_up(x, m):
    return (x + m - 1) // m * m


# ---------------------------------------------------------------------------
# Pallas kernels
# ---------------------------------------------------------------------------
def _conv3x3_relu_kernel(x_ref, w_ref, b_ref, o_ref, *, fold_all_taps):
    """3x3 'same' conv + bias + ReLU for one (image, Cout block).

    x_ref: (1, H+2, Wp+2, Cin) bf16  zero-padded input (1px halo, right-padded W)
    w_ref: (9*Cin, Co) bf16 if fold_all_taps else (3, 3*Cin, Co) bf16
           (K axis ordered ky-major, then kx, then Cin)
    b_ref: (1, Co)  f32
    o_ref: (1, H, Wp, Co) bf16

    The kx taps are folded into the matmul K dimension (lane-axis concat of the
    three shifted windows): 3 MXU matmuls per row block with K=3*Cin, or a
    single K=9*Cin matmul for small Cin.  Activations stay bf16 until the MXU;
    accumulation is f32.  The flattened M dimension (H*Wp) is blocked into RB-row
    chunks so the f32 accumulator stays register-sized instead of spilling.
    """
    H, Wp, Co = o_ref.shape[1], o_ref.shape[2], o_ref.shape[3]
    Cin = x_ref.shape[3]
    RB = 8 if H % 8 == 0 else H          # row block -> M = RB * Wp per chunk
    n_rb = H // RB
    bias = b_ref[...]                    # (1, Co) f32, loaded once

    def row_block(rb, carry):
        r0 = pl.multiple_of(rb * RB, RB)

        def ky_slab(ky):
            rows = x_ref[0, pl.ds(r0 + ky, RB), :, :]            # (RB, Wp+2, Cin) bf16
            # kx shift -> lane-axis concat (no f32 widen; stays bf16).
            taps = [rows[:, kx:kx + Wp, :] for kx in range(3)]
            return jnp.concatenate(taps, axis=-1)                 # (RB, Wp, 3*Cin)

        if fold_all_taps:
            # Full im2col for small Cin (first layer): one K=9*Cin matmul.
            slab = jnp.concatenate([ky_slab(ky) for ky in range(3)], axis=-1)
            slab = slab.reshape(RB * Wp, 9 * Cin)
            acc = jnp.dot(slab, w_ref[...], preferred_element_type=jnp.float32)
        else:
            acc = jnp.zeros((RB * Wp, Co), jnp.float32)
            for ky in range(3):                                   # fully unrolled taps
                slab = ky_slab(ky).reshape(RB * Wp, 3 * Cin)
                acc = acc + jnp.dot(slab, w_ref[ky],
                                    preferred_element_type=jnp.float32)

        out = jnp.maximum(acc + bias, 0.0)                        # bias + ReLU (f32)
        o_ref[0, pl.ds(r0, RB), :, :] = out.reshape(RB, Wp, Co).astype(o_ref.dtype)
        return carry

    jax.lax.fori_loop(0, n_rb, row_block, 0, unroll=False)


def _maxpool2x2_kernel(x_ref, o_ref):
    """2x2 / stride-2 max pool for one (image, channel block).

    Window decimation is done in-kernel (reshape + two single-axis max
    reductions) so the input is read from HBM exactly once — no strided corner
    copies materialized in the wrapper.
    """
    Ho, Wo, C = o_ref.shape[1], o_ref.shape[2], o_ref.shape[3]
    x = x_ref[0].reshape(Ho, 2, Wo, 2, C)            # (Ho, 2, Wo, 2, C) bf16
    y = jnp.max(x, axis=3)                           # max over the W pair
    o_ref[0] = jnp.max(y, axis=1).astype(o_ref.dtype)  # max over the H pair


def _integration_kernel(xc_ref, xf_ref, wc_ref, wf_ref, b_ref, o_ref):
    """1x1 conv (coarse 512 + fine 512 -> 1) + sigmoid + per-sample min-max norm.

    xc_ref/xf_ref: (1, P, 512) bf16   (P = h*w pixels, flattened in the wrapper)
    wc_ref/wf_ref: (512, 1)    bf16   (first / second half of the 1024-ch weight)
    b_ref:         (1, 1)      f32
    o_ref:         (1, P, 1)   f32
    """
    s = jnp.dot(xc_ref[0], wc_ref[...], preferred_element_type=jnp.float32)
    s = s + jnp.dot(xf_ref[0], wf_ref[...], preferred_element_type=jnp.float32)
    s = jax.nn.sigmoid(s + b_ref[...])                             # (P, 1)
    mn = jnp.min(s, axis=(0, 1), keepdims=True)
    mx = jnp.max(s, axis=(0, 1), keepdims=True)
    # TODO(synk): normalize_map() source is not given in the module; assuming the
    # standard OpenSalicon per-sample min-max normalization.
    o_ref[0] = (s - mn) / (mx - mn + 1e-8)


# ---------------------------------------------------------------------------
# pallas_call wrappers
# ---------------------------------------------------------------------------
def conv3x3_relu(x, w, b):
    """x: (B,H,W,Cin) bf16; w: (3, 3*Cin, Cout) bf16 (ky, kx*Cin+ci, co); b: (1,Cout) f32."""
    B, H, W, Cin = x.shape
    Cout = w.shape[-1]
    Wp = max(_BF16_SUBLANE, _round_up(W, _BF16_SUBLANE))
    # 'same' halo + right zero-pad up to Wp (glue).  The extra columns only ever
    # produce ReLU(bias) garbage that is sliced off below, before any pool/halo
    # can see it.
    # TODO(synk): move the halo/pad in-kernel (VMEM memset) to avoid the XLA pad
    #             HBM round trip at production (224/448) resolutions.
    xp = jnp.pad(x, ((0, 0), (1, 1), (1, 1 + Wp - W), (0, 0)))

    co = min(Cout, 256)                  # Cout block (second parallel grid axis)
    n_co = Cout // co
    fold = (9 * Cin <= 128)              # small-Cin first layer: full im2col (K=9*Cin)
    wk = w.reshape(9 * Cin, Cout) if fold else w
    w_spec = (pl.BlockSpec((9 * Cin, co), lambda bb, cc: (0, cc)) if fold
              else pl.BlockSpec((3, 3 * Cin, co), lambda bb, cc: (0, 0, cc)))
    kernel = functools.partial(_conv3x3_relu_kernel, fold_all_taps=fold)

    out = pl.pallas_call(
        kernel,
        out_shape=jax.ShapeDtypeStruct((B, H, Wp, Cout), jnp.bfloat16),
        grid_spec=pltpu.PrefetchScalarGridSpec(
            num_scalar_prefetch=0,
            grid=(B, n_co),              # Cout block innermost: image not re-fetched
            in_specs=[
                pl.BlockSpec((1, H + 2, Wp + 2, Cin), lambda bb, cc: (bb, 0, 0, 0)),
                w_spec,
                pl.BlockSpec((1, co), lambda bb, cc: (0, cc)),
            ],
            out_specs=pl.BlockSpec((1, H, Wp, co), lambda bb, cc: (bb, 0, 0, cc)),
        ),
        compiler_params=pltpu.CompilerParams(
            dimension_semantics=("parallel", "parallel"),
            vmem_limit_bytes=48 * 1024 * 1024),   # <=48 MiB: headroom on v7x (64 MiB/TC)
    )(xp, wk, b)
    return out if Wp == W else out[:, :, :W, :]


def maxpool2x2(x):
    B, H, W, C = x.shape
    Ho, Wo = H // 2, W // 2
    cb = min(C, 256)
    return pl.pallas_call(
        _maxpool2x2_kernel,
        out_shape=jax.ShapeDtypeStruct((B, Ho, Wo, C), x.dtype),
        grid_spec=pltpu.PrefetchScalarGridSpec(
            num_scalar_prefetch=0, grid=(B, C // cb),
            in_specs=[pl.BlockSpec((1, H, W, cb), lambda bb, cc: (bb, 0, 0, cc))],
            out_specs=pl.BlockSpec((1, Ho, Wo, cb), lambda bb, cc: (bb, 0, 0, cc))),
        compiler_params=pltpu.CompilerParams(
            dimension_semantics=("parallel", "parallel"),
            vmem_limit_bytes=32 * 1024 * 1024),
    )(x)


def integration(coarse, fine, wc, wf, bias):
    """coarse/fine: (B, h, w, 512) bf16 -> (B, h, w, 1) f32 saliency."""
    B, h, w_sp, C = coarse.shape
    P = h * w_sp
    xc = coarse.reshape(B, P, C)         # flatten pixels in glue (layout-cheap)
    xf = fine.reshape(B, P, C)
    out = pl.pallas_call(
        _integration_kernel,
        out_shape=jax.ShapeDtypeStruct((B, P, 1), jnp.float32),
        grid_spec=pltpu.PrefetchScalarGridSpec(
            num_scalar_prefetch=0, grid=(B,),
            in_specs=[
                pl.BlockSpec((1, P, C), lambda i: (i, 0, 0)),
                pl.BlockSpec((1, P, C), lambda i: (i, 0, 0)),
                pl.BlockSpec((C, 1), lambda i: (0, 0)),
                pl.BlockSpec((C, 1), lambda i: (0, 0)),
                pl.BlockSpec((1, 1), lambda i: (0, 0)),
            ],
            out_specs=pl.BlockSpec((1, P, 1), lambda i: (i, 0, 0)),
        ),
        compiler_params=pltpu.CompilerParams(
            dimension_semantics=("parallel",),
            vmem_limit_bytes=32 * 1024 * 1024),
    )(xc, xf, wc, wf, bias)
    return out.reshape(B, h, w_sp, 1)


# ---------------------------------------------------------------------------
# Model glue
# ---------------------------------------------------------------------------
def upsample_nearest(x, factor):
    # nn.Upsample / F.interpolate 'nearest' with an integer ratio == index repeat.
    # Single broadcast + reshape (no intermediate per-axis repeat copies).
    # TODO(synk): at production resolution, fold this into the first fine-path
    #             conv via its index_map instead of materializing the 2x image.
    B, H, W, C = x.shape
    y = jnp.broadcast_to(x[:, :, None, :, None, :], (B, H, factor, W, factor, C))
    return y.reshape(B, H * factor, W * factor, C)


def vgg16_features(x, conv_params):
    h = x
    ci = 0
    for v in VGG16_CFG:
        if v == "M":
            h = maxpool2x2(h)
        else:
            w, b = conv_params[ci]
            h = conv3x3_relu(h, w, b)
            ci += 1
    return h


def salicon_forward(x_nchw, params):
    """Pallas equivalent of Salicon.forward.  x_nchw: (B, 3, IMG_H, IMG_W) f32."""
    x = jnp.transpose(x_nchw, (0, 2, 3, 1)).astype(jnp.bfloat16)    # NCHW -> NHWC
    fine_img = upsample_nearest(x, 2)                               # (B, 2H, 2W, 3)
    coarse_feats = vgg16_features(x, params["convs"])               # (B, H/32, W/32, 512)
    coarse_feats = upsample_nearest(coarse_feats, 2)                # (B, H/16, W/16, 512)
    fine_feats = vgg16_features(fine_img, params["convs"])          # (B, H/16, W/16, 512)
    # 1x1 conv over [coarse(512) | fine(512)] done with split weight halves
    # (no 1024-channel concat materialized).
    sal = integration(coarse_feats, fine_feats,
                      params["int_wc"], params["int_wf"], params["int_b"])
    sal = upsample_nearest(sal, 16)                                 # (B, H, W, 1) f32
    return jnp.transpose(sal, (0, 3, 1, 2))                         # (B, 1, H, W)


def init_params(key):
    # Deterministic synthetic weights (no pretrained checkpoint load).  Conv
    # weights are stored K-packed bf16: (3, 3*Cin, Cout) with K ordered
    # ky-major, then kx, then Cin (== HWIO (3,3,Cin,Cout) reshaped).
    params = {"convs": []}
    cin = 3
    for v in VGG16_CFG:
        if v == "M":
            continue
        key, wk = jax.random.split(key)
        std = (2.0 / (9 * cin)) ** 0.5                   # He init (ReLU)
        w = std * jax.random.normal(wk, (3, 3, cin, v), jnp.float32)
        params["convs"].append((w.reshape(3, 3 * cin, v).astype(jnp.bfloat16),
                                jnp.zeros((1, v), jnp.float32)))
        cin = v
    key, wk = jax.random.split(key)
    w_int = (1.0 / 1024.0 ** 0.5) * jax.random.normal(wk, (1024, 1), jnp.float32)
    # Channel order matches the concat order [coarse(512), fine(512)].
    params["int_wc"] = w_int[:512].astype(jnp.bfloat16)
    params["int_wf"] = w_int[512:].astype(jnp.bfloat16)
    params["int_b"] = jnp.zeros((1, 1), jnp.float32)
    return params


if __name__ == "__main__":
    key = jax.random.PRNGKey(0)
    k_par, k_in, k1, k2, k3 = jax.random.split(key, 5)

    # ---- unit checks: Pallas kernels vs XLA reference (same bf16-in/f32-acc) ----
    def conv_ref(x, w_packed, b):
        cin, cout = x.shape[-1], w_packed.shape[-1]
        w_hwio = w_packed.reshape(3, 3, cin, cout)
        y = jax.lax.conv_general_dilated(
            x, w_hwio, (1, 1), "SAME",
            dimension_numbers=("NHWC", "HWIO", "NHWC"),
            preferred_element_type=jnp.float32)
        return jnp.maximum(y + b[0], 0.0).astype(jnp.bfloat16)

    for cin, cout, kk in ((3, 64, k1), (32, 512, k2)):   # fold path / Cout-blocked path
        kx_, kw_, kb_ = jax.random.split(kk, 3)
        xt = jax.random.normal(kx_, (2, 6, 10, cin), jnp.float32).astype(jnp.bfloat16)
        wt = ((2.0 / (9 * cin)) ** 0.5 *
              jax.random.normal(kw_, (3, 3 * cin, cout), jnp.float32)).astype(jnp.bfloat16)
        bt = 0.1 * jax.random.normal(kb_, (1, cout), jnp.float32)
        got = jax.jit(conv3x3_relu)(xt, wt, bt)
        want = conv_ref(xt, wt, bt)
        assert jnp.allclose(got.astype(jnp.float32), want.astype(jnp.float32),
                            atol=5e-2, rtol=5e-2), "conv3x3_relu mismatch"

    xp_ = jax.random.normal(k3, (2, 8, 12, 64), jnp.float32).astype(jnp.bfloat16)
    got = jax.jit(maxpool2x2)(xp_)
    want = jnp.max(xp_.reshape(2, 4, 2, 6, 2, 64), axis=(2, 4))
    assert jnp.allclose(got.astype(jnp.float32), want.astype(jnp.float32)), "maxpool mismatch"

    # ---- full forward -----------------------------------------------------------
    params = init_params(k_par)
    x = jax.random.normal(k_in, (2, 3, IMG_H, IMG_W), jnp.float32)

    fwd = jax.jit(salicon_forward)
    out = jax.block_until_ready(fwd(x, params))

    assert out.shape == (2, 1, IMG_H, IMG_W), out.shape
    assert out.dtype == jnp.float32
    assert bool(jnp.all(jnp.isfinite(out)))
    print("KERNEL_OK")
</pallas_src>

<mosaic_0001>
module attributes {stable_mosaic.version = 11 : i64} {
  func.func @_conv3x3_relu_kernel(%arg0: i32, %arg1: i32, %arg2: memref<1x8x18x3xbf16, #tpu.memory_space<vmem>>, %arg3: memref<27x64xbf16, #tpu.memory_space<vmem>>, %arg4: memref<1x64xf32, #tpu.memory_space<vmem>>, %arg5: memref<1x6x16x64xbf16, #tpu.memory_space<vmem>>) attributes {dimension_semantics = [#tpu.dimension_semantics<parallel>, #tpu.dimension_semantics<parallel>], iteration_bounds = array<i64: 2, 1>, scalar_prefetch = 0 : i64, scratch_operands = 0 : i64, tpu.core_type = #tpu.core_type<tc>, window_params = [{transform_indices = @transform_0, window_bounds = array<i64: 1, 8, 18, 3>}, {transform_indices = @transform_1, window_bounds = array<i64: 27, 64>}, {transform_indices = @transform_2, window_bounds = array<i64: 1, 64>}, {transform_indices = @transform_3, window_bounds = array<i64: 1, 6, 16, 64>}]} {
    %c0 = arith.constant 0 : index
    %c0_0 = arith.constant 0 : index
    %0 = vector.load %arg4[%c0, %c0_0] : memref<1x64xf32, #tpu.memory_space<vmem>>, vector<1x64xf32>
    %c0_i32 = arith.constant 0 : i32
    %c6_i32 = arith.constant 6 : i32
    %1 = arith.muli %c0_i32, %c6_i32 : i32
    %2 = tpu.assume_multiple %1, 6 : i32
    %c0_i32_1 = arith.constant 0 : i32
    %3 = arith.addi %2, %c0_i32_1 : i32
    %c0_2 = arith.constant 0 : index
    %4 = arith.index_cast %3 : i32 to index
    %c0_3 = arith.constant 0 : index
    %c0_4 = arith.constant 0 : index
    %5 = vector.load %arg2[%c0_2, %4, %c0_3, %c0_4] : memref<1x8x18x3xbf16, #tpu.memory_space<vmem>>, vector<1x6x18x3xbf16>
    %6 = vector.shape_cast %5 : vector<1x6x18x3xbf16> to vector<6x18x3xbf16>
    %7 = vector.extract_strided_slice %6 {offsets = [0, 0, 0], sizes = [6, 16, 3], strides = [1, 1, 1]} : vector<6x18x3xbf16> to vector<6x16x3xbf16>
    %8 = vector.extract_strided_slice %6 {offsets = [0, 1, 0], sizes = [6, 16, 3], strides = [1, 1, 1]} : vector<6x18x3xbf16> to vector<6x16x3xbf16>
    %9 = vector.extract_strided_slice %6 {offsets = [0, 2, 0], sizes = [6, 16, 3], strides = [1, 1, 1]} : vector<6x18x3xbf16> to vector<6x16x3xbf16>
    %10 = tpu.concatenate %7, %8, %9 in 2 : vector<6x16x3xbf16>, vector<6x16x3xbf16>, vector<6x16x3xbf16> -> vector<6x16x9xbf16>
    %c1_i32 = arith.constant 1 : i32
    %11 = arith.addi %2, %c1_i32 : i32
    %c0_5 = arith.constant 0 : index
    %12 = arith.index_cast %11 : i32 to index
    %c0_6 = arith.constant 0 : index
    %c0_7 = arith.constant 0 : index
    %13 = vector.load %arg2[%c0_5, %12, %c0_6, %c0_7] : memref<1x8x18x3xbf16, #tpu.memory_space<vmem>>, vector<1x6x18x3xbf16>
    %14 = vector.shape_cast %13 : vector<1x6x18x3xbf16> to vector<6x18x3xbf16>
    %15 = vector.extract_strided_slice %14 {offsets = [0, 0, 0], sizes = [6, 16, 3], strides = [1, 1, 1]} : vector<6x18x3xbf16> to vector<6x16x3xbf16>
    %16 = vector.extract_strided_slice %14 {offsets = [0, 1, 0], sizes = [6, 16, 3], strides = [1, 1, 1]} : vector<6x18x3xbf16> to vector<6x16x3xbf16>
    %17 = vector.extract_strided_slice %14 {offsets = [0, 2, 0], sizes = [6, 16, 3], strides = [1, 1, 1]} : vector<6x18x3xbf16> to vector<6x16x3xbf16>
    %18 = tpu.concatenate %15, %16, %17 in 2 : vector<6x16x3xbf16>, vector<6x16x3xbf16>, vector<6x16x3xbf16> -> vector<6x16x9xbf16>
    %c2_i32 = arith.constant 2 : i32
    %19 = arith.addi %2, %c2_i32 : i32
    %c0_8 = arith.constant 0 : index
    %20 = arith.index_cast %19 : i32 to index
    %c0_9 = arith.constant 0 : index
    %c0_10 = arith.constant 0 : index
    %21 = vector.load %arg2[%c0_8, %20, %c0_9, %c0_10] : memref<1x8x18x3xbf16, #tpu.memory_space<vmem>>, vector<1x6x18x3xbf16>
    %22 = vector.shape_cast %21 : vector<1x6x18x3xbf16> to vector<6x18x3xbf16>
    %23 = vector.extract_strided_slice %22 {offsets = [0, 0, 0], sizes = [6, 16, 3], strides = [1, 1, 1]} : vector<6x18x3xbf16> to vector<6x16x3xbf16>
    %24 = vector.extract_strided_slice %22 {offsets = [0, 1, 0], sizes = [6, 16, 3], strides = [1, 1, 1]} : vector<6x18x3xbf16> to vector<6x16x3xbf16>
    %25 = vector.extract_strided_slice %22 {offsets = [0, 2, 0], sizes = [6, 16, 3], strides = [1, 1, 1]} : vector<6x18x3xbf16> to vector<6x16x3xbf16>
    %26 = tpu.concatenate %23, %24, %25 in 2 : vector<6x16x3xbf16>, vector<6x16x3xbf16>, vector<6x16x3xbf16> -> vector<6x16x9xbf16>
    %27 = tpu.concatenate %10, %18, %26 in 2 : vector<6x16x9xbf16>, vector<6x16x9xbf16>, vector<6x16x9xbf16> -> vector<6x16x27xbf16>
    %28 = vector.shape_cast %27 : vector<6x16x27xbf16> to vector<96x27xbf16>
    %c0_11 = arith.constant 0 : index
    %c0_12 = arith.constant 0 : index
    %29 = vector.load %arg3[%c0_11, %c0_12] : memref<27x64xbf16, #tpu.memory_space<vmem>>, vector<27x64xbf16>
    %cst = arith.constant dense<0.000000e+00> : vector<96x64xf32>
    %30 = tpu.matmul %28, %29, %cst {dimension_numbers = #tpu.dot_dimension_numbers<[1], [0], [0], [1], [0, 0, 1, 1], [], []>} : vector<96x27xbf16>, vector<27x64xbf16>, vector<96x64xf32> -> vector<96x64xf32>
    %31 = vector.broadcast %0 : vector<1x64xf32> to vector<96x64xf32>
    %32 = arith.addf %30, %31 : vector<96x64xf32>
    %cst_13 = arith.constant 0.000000e+00 : f32
    %33 = vector.broadcast %cst_13 : f32 to vector<96x64xf32>
    %34 = arith.maximumf %32, %33 : vector<96x64xf32>
    %35 = vector.shape_cast %34 : vector<96x64xf32> to vector<6x16x64xf32>
    %36 = arith.truncf %35 : vector<6x16x64xf32> to vector<6x16x64xbf16>
    %c0_14 = arith.constant 0 : index
    %37 = arith.index_cast %2 : i32 to index
    %c0_15 = arith.constant 0 : index
    %c0_16 = arith.constant 0 : index
    %38 = vector.load %arg5[%c0_14, %37, %c0_15, %c0_16] : memref<1x6x16x64xbf16, #tpu.memory_space<vmem>>, vector<1x6x16x64xbf16>
    %39 = vector.shape_cast %38 : vector<1x6x16x64xbf16> to vector<6x16x64xbf16>
    %40 = vector.shape_cast %36 : vector<6x16x64xbf16> to vector<1x6x16x64xbf16>
    tpu.vector_store %arg5[%c0_14, %37, %c0_15, %c0_16], %40 {strides = array<i32>} : memref<1x6x16x64xbf16, #tpu.memory_space<vmem>>, vector<1x6x16x64xbf16>,
    %c1_i32_17 = arith.constant 1 : i32
    return
  }
  func.func @transform_0(%arg0: i32, %arg1: i32) -> (i32, i32, i32, i32) {
    %c0_i32 = arith.constant 0 : i32
    %c0_i32_0 = arith.constant 0 : i32
    %c0_i32_1 = arith.constant 0 : i32
    %c0_i32_2 = arith.constant 0 : i32
    return %arg0, %c0_i32, %c0_i32_0, %c0_i32_1 : i32, i32, i32, i32
  }
  func.func @transform_1(%arg0: i32, %arg1: i32) -> (i32, i32) {
    %c0_i32 = arith.constant 0 : i32
    %c0_i32_0 = arith.constant 0 : i32
    return %c0_i32, %arg1 : i32, i32
  }
  func.func @transform_2(%arg0: i32, %arg1: i32) -> (i32, i32) {
    %c0_i32 = arith.constant 0 : i32
    %c0_i32_0 = arith.constant 0 : i32
    return %c0_i32, %arg1 : i32, i32
  }
  func.func @transform_3(%arg0: i32, %arg1: i32) -> (i32, i32, i32, i32) {
    %c0_i32 = arith.constant 0 : i32
    %c0_i32_0 = arith.constant 0 : i32
    %c0_i32_1 = arith.constant 0 : i32
    return %arg0, %c0_i32, %c0_i32_0, %arg1 : i32, i32, i32, i32
  }
}

</mosaic_0001>

<llo_original>
// kernel: conv3x3_relu.1
$region0: #{conv3x3_relu.1}
  #allocation0 [shape = 'u32[]', space=smem, size = 0x4, offset = 0x4, fixed_abs, tag = 'smem constant byte address 0x4 - core index']
  #allocation1 [shape = 'u32[144,128]{1,0:T(1,128)}', space=vmem, size = 0x12000, scoped, tag = 'internal scratch']
  %s0 = inlined_call_operand.vmem [shape: bf16[2,8,18,3], index: 0, kind: input, shape index: {}]
  %s1 = inlined_call_operand.vmem [shape: bf16[27,64], index: 1, kind: input, shape index: {}]
  %s2 = inlined_call_operand.vmem [shape: f32[1,64], index: 2, kind: input, shape index: {}]
  %s3 = inlined_call_operand.vmem [shape: bf16[2,6,16,64], index: 3, kind: output, shape index: {}]
  %s4 = sld [smem:[#allocation0]]
  $region45: #{conv3x3_relu.1} parent=0
    _
  %s6 = ssub.s32 1, %s4
  %s7 = scalar_select 0, %s6, %s4
  loop: start=0, step=1, limit=4
  $region2: #{conv3x3_relu.1} parent=0 // loop_pre_header
    _
  $region3: #{conv3x3_relu.1} parent=0 // loop_header
    %s9 = sphi 0, %s13
    %p10 = scmp.ge.s32.totalorder %s9, 4
    %s16 = sphi 0, %s28
    %s17 = sphi 0, %s24
    %s18 = sphi 0, %s16
    %s19 = sphi 0, %s17
    %s20 = sphi 0, %s18
    %s21 = sphi 0, %s19
    %s31 = sphi 0, %s33
    %s34 = sphi 0, %s31
    %s35 = sphi 0, %s34
    %s51 = sphi 0, %s35
    %s57 = sphi 0, %s59
    %s60 = sphi 0, %s57
    %s61 = sphi 0, %s60
    %s77 = sphi 0, %s61
    %s83 = sphi 0, %s85
    %s86 = sphi 0, %s83
    %s87 = sphi 0, %s86
    %s103 = sphi 0, %s87
    %s111 = sphi 0, %s113
    %s114 = sphi 0, %s111
    %s115 = sphi 0, %s114
    %s131 = sphi 0, %s115
  $region4: #{conv3x3_relu.1} parent=0 // loop_header_branch
    %12 = sbr.rel (%p10) target = $region8
  $region5: #{conv3x3_relu.1} parent=0 // loop_body
    %s14 = ssub.s32 %s9, 1
    %s15 = ssub.s32 %s9, 2
    %s22 = sadd.s32 1, %s17
    %p23 = scmp.ge.s32.totalorder %s22, 1
    %s24 = scalar_select %p23, 0, %s22
    %s25 = sadd.s32 1, %s16
    %s26 = scalar_select %p23, %s25, %s16
    %p27 = scmp.ge.s32.totalorder %s26, 2
    %s28 = scalar_select %p27, 0, %s26
    %s29 = ssub.s32 %s16, %s28
    %p30 = scmp.eq.s32.totalorder %s29, 0
    %s32 = sadd.s32 %s31, 1
    %s33 = scalar_select %p30, %s31, %s32
    %p36 = pneg %p30
    %p37 = scmp.eq.s32.totalorder %s9, 1
    %p38 = por %p36, %p37
    %p39 = scmp.ne.s32.totalorder %s31, %s34
    %p40 = scmp.eq.s32.totalorder %s9, 0
    %p41 = por %p39, %p40
    %p42 = scmp.ne.s32.totalorder %s31, %s34
    %p43 = scmp.eq.s32.totalorder %s14, 1
    %p44 = por %p42, %p43
    %p45 = scmp.ne.s32.totalorder %s34, %s35
    %p46 = scmp.eq.s32.totalorder %s14, 0
    %p47 = por %p45, %p46
    %p48 = scmp.ne.s32.totalorder %s34, %s35
    %p49 = scmp.eq.s32.totalorder %s15, 1
    %p50 = por %p48, %p49
    %p52 = scmp.ne.s32.totalorder %s35, %s51
    %p53 = scmp.eq.s32.totalorder %s15, 0
    %p54 = por %p52, %p53
    %s55 = ssub.s32 %s17, %s24
    %p56 = scmp.eq.s32.totalorder %s55, 0
    %s58 = sadd.s32 %s57, 1
    %s59 = scalar_select %p56, %s57, %s58
    %p62 = pneg %p56
    %p63 = scmp.eq.s32.totalorder %s9, 1
    %p64 = por %p62, %p63
    %p65 = scmp.ne.s32.totalorder %s57, %s60
    %p66 = scmp.eq.s32.totalorder %s9, 0
    %p67 = por %p65, %p66
    %p68 = scmp.ne.s32.totalorder %s57, %s60
    %p69 = scmp.eq.s32.totalorder %s14, 1
    %p70 = por %p68, %p69
    %p71 = scmp.ne.s32.totalorder %s60, %s61
    %p72 = scmp.eq.s32.totalorder %s14, 0
    %p73 = por %p71, %p72
    %p74 = scmp.ne.s32.totalorder %s60, %s61
    %p75 = scmp.eq.s32.totalorder %s15, 1
    %p76 = por %p74, %p75
    %p78 = scmp.ne.s32.totalorder %s61, %s77
    %p79 = scmp.eq.s32.totalorder %s15, 0
    %p80 = por %p78, %p79
    %s81 = ssub.s32 %s17, %s24
    %p82 = scmp.eq.s32.totalorder %s81, 0
    %s84 = sadd.s32 %s83, 1
    %s85 = scalar_select %p82, %s83, %s84
    %p88 = pneg %p82
    %p89 = scmp.eq.s32.totalorder %s9, 1
    %p90 = por %p88, %p89
    %p91 = scmp.ne.s32.totalorder %s83, %s86
    %p92 = scmp.eq.s32.totalorder %s9, 0
    %p93 = por %p91, %p92
    %p94 = scmp.ne.s32.totalorder %s83, %s86
    %p95 = scmp.eq.s32.totalorder %s14, 1
    %p96 = por %p94, %p95
    %p97 = scmp.ne.s32.totalorder %s86, %s87
    %p98 = scmp.eq.s32.totalorder %s14, 0
    %p99 = por %p97, %p98
    %p100 = scmp.ne.s32.totalorder %s86, %s87
    %p101 = scmp.eq.s32.totalorder %s15, 1
    %p102 = por %p100, %p101
    %p104 = scmp.ne.s32.totalorder %s87, %s103
    %p105 = scmp.eq.s32.totalorder %s15, 0
    %p106 = por %p104, %p105
    %s107 = ssub.s32 %s16, %s28
    %s108 = ssub.s32 %s17, %s24
    %s109 = sor.u32 %s107, %s108
    %p110 = scmp.eq.s32.totalorder %s109, 0
    %s112 = sadd.s32 %s111, 1
    %s113 = scalar_select %p110, %s111, %s112
    %p116 = pneg %p110
    %p117 = scmp.eq.s32.totalorder %s9, 1
    %p118 = por %p116, %p117
    %p119 = scmp.ne.s32.totalorder %s111, %s114
    %p120 = scmp.eq.s32.totalorder %s9, 0
    %p121 = por %p119, %p120
    %p122 = scmp.ne.s32.totalorder %s111, %s114
    %p123 = scmp.eq.s32.totalorder %s14, 1
    %p124 = por %p122, %p123
    %p125 = scmp.ne.s32.totalorder %s114, %s115
    %p126 = scmp.eq.s32.totalorder %s14, 0
    %p127 = por %p125, %p126
    %p128 = scmp.ne.s32.totalorder %s114, %s115
    %p129 = scmp.eq.s32.totalorder %s15, 1
    %p130 = por %p128, %p129
    %p132 = scmp.ne.s32.totalorder %s115, %s131
    %p133 = scmp.eq.s32.totalorder %s15, 0
    %p134 = por %p132, %p133
    %p135 = scmp.le.s32.totalorder 1, %s9
    %p136 = scmp.lt.s32.totalorder %s9, 3
    %p137 = pnand %p135, %p136
    %p138 = pneg %p137
    // Predicated region
    $region9: #{conv3x3_relu.1} parent=5 // pred_check
      _
    $region10: #{conv3x3_relu.1} parent=5 // pred_check_branch
      %140 = sbr.rel (%p137) target = $region12
    $region11: #{conv3x3_relu.1} parent=5 // pred_region
      %s141 = ssub.s32 %s9, 1
      // Predicated region
      $region13: #{conv3x3_relu.1} parent=11 // pred_check
        %p142 = pneg %p73
      $region14: #{conv3x3_relu.1} parent=11 // pred_check_branch
        %144 = sbr.rel (%p142) target = $region16
      $region15: #{conv3x3_relu.1} parent=11 // pred_region
        %p145 = scmp.lt.s32.totalorder %s19, 0
        %s146 = scalar_select %p145, %s19, 0
        %s147 = smul.addr %s146, 4
        %s148 = scalar_lea.vmem %s1, %s147
      $region16: #{conv3x3_relu.1} parent=11 // pred_fallthru
        _
      // Predicated region
      $region17: #{conv3x3_relu.1} parent=11 // pred_check
        %p149 = pneg %p99
      $region18: #{conv3x3_relu.1} parent=11 // pred_check_branch
        %151 = sbr.rel (%p149) target = $region20
      $region19: #{conv3x3_relu.1} parent=11 // pred_region
        %p152 = scmp.lt.s32.totalorder %s19, 0
        %s153 = scalar_select %p152, %s19, 0
        %s154 = scalar_lea.vmem %s2, %s153
      $region20: #{conv3x3_relu.1} parent=11 // pred_fallthru
        _
    $region12: #{conv3x3_relu.1} parent=5 // pred_fallthru
      _
    %p155 = scmp.lt.s32.totalorder %s9, 2
    // Predicated region
    $region21: #{conv3x3_relu.1} parent=5 // pred_check
      %p156 = pneg %p155
    $region22: #{conv3x3_relu.1} parent=5 // pred_check_branch
      %158 = sbr.rel (%p156) target = $region24
    $region23: #{conv3x3_relu.1} parent=5 // pred_region
      // Predicated region
      $region25: #{conv3x3_relu.1} parent=23 // pred_check
        %p159 = pneg %p41
      $region26: #{conv3x3_relu.1} parent=23 // pred_check_branch
        %161 = sbr.rel (%p159) target = $region28
      $region27: #{conv3x3_relu.1} parent=23 // pred_region
        %p162 = scmp.lt.s32.totalorder %s16, 1
        %s163 = scalar_select %p162, %s16, 1
        %s164 = smul.addr %s163, 24
        %s165 = smul.addr %s164, 4
        %s166 = scalar_lea.vmem %s0, %s165
      $region28: #{conv3x3_relu.1} parent=23 // pred_fallthru
        _
    $region24: #{conv3x3_relu.1} parent=5 // pred_fallthru
      _
    %p167 = scmp.le.s32.totalorder 1, %s9
    %p168 = scmp.lt.s32.totalorder %s9, 3
    %p169 = pnand %p167, %p168
    %p170 = pneg %p169
    // Predicated region
    $region29: #{conv3x3_relu.1} parent=5 // pred_check
      _
    $region30: #{conv3x3_relu.1} parent=5 // pred_check_branch
      %172 = sbr.rel (%p169) target = $region32
    $region31: #{conv3x3_relu.1} parent=5 // pred_region
      %s173 = ssub.s32 %s9, 1
      %p174 = scmp.lt.s32.totalorder %s18, 1
      %s175 = scalar_select %p174, %s18, 1
      %s176 = smul.addr %s175, 24
      %s177 = smul.addr %s176, 4
      %s178 = scalar_lea.vmem %s0, %s177
      %p179 = pneg %p47
      %p180 = pneg %p44
      %p181 = scmp.lt.s32.totalorder %s19, 0
      %s182 = scalar_select %p181, %s19, 0
      %s183 = smul.addr %s182, 4
      %s184 = scalar_lea.vmem %s1, %s183
      %p185 = pneg %p73
      %p186 = pneg %p70
      %p187 = scmp.lt.s32.totalorder %s19, 0
      %s188 = scalar_select %p187, %s19, 0
      %s189 = scalar_lea.vmem %s2, %s188
      %p190 = pneg %p99
      %p191 = pneg %p96
      %p192 = pneg %p127
      %p193 = pneg %p124
      %p194 = scmp.lt.s32.totalorder %s18, 1
      %s195 = scalar_select %p194, %s18, 1
      %p196 = scmp.lt.s32.totalorder %s19, 0
      %s197 = scalar_select %p196, %s19, 0
      %s198 = smul.addr %s195, 12
      %s199 = sadd.s32 %s197, %s198
      %s200 = smul.addr %s199, 4
      %s201 = scalar_lea.vmem %s3, %s200
      %p202 = scmp.lt.s32.totalorder %s18, 1
      %s203 = scalar_select %p202, %s18, 1
      %s204 = smul.addr %s203, 24
      %s205 = smul.addr %s204, 4
      %s206 = scalar_lea.vmem %s0, %s205
      %p207 = scmp.lt.s32.totalorder %s19, 0
      %s208 = scalar_select %p207, %s19, 0
      %s209 = smul.addr %s208, 4
      %s210 = scalar_lea.vmem %s1, %s209
      %p211 = scmp.lt.s32.totalorder %s19, 0
      %s212 = scalar_select %p211, %s19, 0
      %s213 = scalar_lea.vmem %s2, %s212
      %p214 = scmp.lt.s32.totalorder %s18, 1
      %s215 = scalar_select %p214, %s18, 1
      %p216 = scmp.lt.s32.totalorder %s19, 0
      %s217 = scalar_select %p216, %s19, 0
      %s218 = smul.addr %s215, 12
      %s219 = sadd.s32 %s217, %s218
      %s220 = smul.addr %s219, 4
      %s221 = scalar_lea.vmem %s3, %s220
      %v223 = vld [vmem:[%s213] sm:$0x1]
      %s224 = smul.u32 0, 3
      %s225 = smul.addr %s224, 4
      %s226 = scalar_lea.vmem %s206, %s225
      %v227 = vld [vmem:[%s226] sm:$0xf]
      %v228 = vld [vmem:[%s226 + $0x4] sm:$0xf]
      %v229 = vld [vmem:[%s226 + $0x8] sm:$0x1]
      %v230 = vld [vmem:[%s226 + $0xc] sm:$0xf]
      %v231 = vld [vmem:[%s226 + $0x10] sm:$0xf]
      %v232 = vld [vmem:[%s226 + $0x14] sm:$0x1]
      %v233 = vld [vmem:[%s226 + $0x18] sm:$0xf]
      %v234 = vld [vmem:[%s226 + $0x1c] sm:$0xf]
      %v235 = vld [vmem:[%s226 + $0x20] sm:$0x1]
      %v236 = vld [vmem:[%s226 + $0x24] sm:$0xf]
      %v237 = vld [vmem:[%s226 + $0x28] sm:$0xf]
      %v238 = vld [vmem:[%s226 + $0x2c] sm:$0x1]
      %v239 = vld [vmem:[%s226 + $0x30] sm:$0xf]
      %v240 = vld [vmem:[%s226 + $0x34] sm:$0xf]
      %v241 = vld [vmem:[%s226 + $0x38] sm:$0x1]
      %v242 = vld [vmem:[%s226 + $0x3c] sm:$0xf]
      %v243 = vld [vmem:[%s226 + $0x40] sm:$0xf]
      %v244 = vld [vmem:[%s226 + $0x44] sm:$0x1]
      %v257 = vunpack.c.l.b16 %v227
      %v258 = vunpack.c.l.b16 %v228
      %v259 = vunpack.c.l.b16 %v230
      %v260 = vunpack.c.l.b16 %v231
      %v261 = vunpack.c.l.b16 %v233
      %v262 = vunpack.c.l.b16 %v234
      %v263 = vunpack.c.l.b16 %v236
      %v264 = vunpack.c.l.b16 %v237
      %v265 = vunpack.c.l.b16 %v239
      %v266 = vunpack.c.l.b16 %v240
      %v267 = vunpack.c.l.b16 %v242
      %v268 = vunpack.c.l.b16 %v243
      %v269 = vpack.c.b16 %v258, %v257
      %v270 = vpack.c.b16 %v260, %v259
      %v271 = vpack.c.b16 %v262, %v261
      %v272 = vpack.c.b16 %v264, %v263
      %v273 = vpack.c.b16 %v266, %v265
      %v274 = vpack.c.b16 %v268, %v267
      %v281 = vunpack.c.l.b16 %v229
      %v282 = vunpack.c.l.b16 %v232
      %v283 = vunpack.c.l.b16 %v235
      %v284 = vunpack.c.l.b16 %v238
      %v285 = vunpack.c.l.b16 %v241
      %v286 = vunpack.c.l.b16 %v244
      %v287 = vpack.c.b16 %v281, %v281
      %v288 = vpack.c.b16 %v282, %v282
      %v289 = vpack.c.b16 %v283, %v283
      %v290 = vpack.c.b16 %v284, %v284
      %v291 = vpack.c.b16 %v285, %v285
      %v292 = vpack.c.b16 %v286, %v286
      %vm293 = vsmask.f32 7424
      %v295 = vshrl.u32 %v269, 16
      %v297 = vshll.u32 %v269, 16
      %v299 = vrot.slane %v297, 1
      %v300 = vor.u32 %v295, %v299
      %v302 = vshll.u32 %v287, 16
      %v304 = vrot.slane %v302, 1
      %v305 = vsel %vm293, %v300, %v304
      %v307 = vshrl.u32 %v270, 16
      %v309 = vshll.u32 %v270, 16
      %v311 = vrot.slane %v309, 1
      %v312 = vor.u32 %v307, %v311
      %v314 = vshll.u32 %v288, 16
      %v316 = vrot.slane %v314, 1
      %v317 = vsel %vm293, %v312, %v316
      %v319 = vshrl.u32 %v271, 16
      %v321 = vshll.u32 %v271, 16
      %v323 = vrot.slane %v321, 1
      %v324 = vor.u32 %v319, %v323
      %v326 = vshll.u32 %v289, 16
      %v328 = vrot.slane %v326, 1
      %v329 = vsel %vm293, %v324, %v328
      %v331 = vshrl.u32 %v272, 16
      %v333 = vshll.u32 %v272, 16
      %v335 = vrot.slane %v333, 1
      %v336 = vor.u32 %v331, %v335
      %v338 = vshll.u32 %v290, 16
      %v340 = vrot.slane %v338, 1
      %v341 = vsel %vm293, %v336, %v340
      %v343 = vshrl.u32 %v273, 16
      %v345 = vshll.u32 %v273, 16
      %v347 = vrot.slane %v345, 1
      %v348 = vor.u32 %v343, %v347
      %v350 = vshll.u32 %v291, 16
      %v352 = vrot.slane %v350, 1
      %v353 = vsel %vm293, %v348, %v352
      %v355 = vshrl.u32 %v274, 16
      %v357 = vshll.u32 %v274, 16
      %v359 = vrot.slane %v357, 1
      %v360 = vor.u32 %v355, %v359
      %v362 = vshll.u32 %v292, 16
      %v364 = vrot.slane %v362, 1
      %v365 = vsel %vm293, %v360, %v364
      %366 = vrot.lane.b32.xlu0 %v305, 3
      %v367 = vpop.permute.xlu0 %366
      %368 = vrot.lane.b32.xlu0 %v317, 3
      %v369 = vpop.permute.xlu0 %368
      %370 = vrot.lane.b32.xlu0 %v329, 3
      %v371 = vpop.permute.xlu0 %370
      %372 = vrot.lane.b32.xlu0 %v341, 3
      %v373 = vpop.permute.xlu0 %372
      %374 = vrot.lane.b32.xlu0 %v353, 3
      %v375 = vpop.permute.xlu0 %374
      %376 = vrot.lane.b32.xlu0 %v365, 3
      %v377 = vpop.permute.xlu0 %376
      %vm378 = vcmask 1046528
      %v379 = vrot.slane %v269, 1
      %v380 = vrot.slane %v287, 1
      %v381 = vsel %vm378, %v379, %v380
      %v382 = vrot.slane %v270, 1
      %v383 = vrot.slane %v288, 1
      %v384 = vsel %vm378, %v382, %v383
      %v385 = vrot.slane %v271, 1
      %v386 = vrot.slane %v289, 1
      %v387 = vsel %vm378, %v385, %v386
      %v388 = vrot.slane %v272, 1
      %v389 = vrot.slane %v290, 1
      %v390 = vsel %vm378, %v388, %v389
      %v391 = vrot.slane %v273, 1
      %v392 = vrot.slane %v291, 1
      %v393 = vsel %vm378, %v391, %v392
      %v394 = vrot.slane %v274, 1
      %v395 = vrot.slane %v292, 1
      %v396 = vsel %vm378, %v394, %v395
      %397 = vrot.lane.b32.xlu0 %v381, 6
      %v398 = vpop.permute.xlu0 %397
      %399 = vrot.lane.b32.xlu0 %v384, 6
      %v400 = vpop.permute.xlu0 %399
      %401 = vrot.lane.b32.xlu0 %v387, 6
      %v402 = vpop.permute.xlu0 %401
      %403 = vrot.lane.b32.xlu0 %v390, 6
      %v404 = vpop.permute.xlu0 %403
      %405 = vrot.lane.b32.xlu0 %v393, 6
      %v406 = vpop.permute.xlu0 %405
      %407 = vrot.lane.b32.xlu0 %v396, 6
      %v408 = vpop.permute.xlu0 %407
      %vm409 = vcmask 23552
      %v411 = vsel %vm409, %v269, %v367
      %v413 = vsel %vm409, %v270, %v369
      %v415 = vsel %vm409, %v271, %v371
      %v417 = vsel %vm409, %v272, %v373
      %v419 = vsel %vm409, %v273, %v375
      %v421 = vsel %vm409, %v274, %v377
      %vm422 = vcmask 48128
      %v424 = vsel %vm422, %v411, %v398
      %v426 = vsel %vm422, %v413, %v400
      %v428 = vsel %vm422, %v415, %v402
      %v430 = vsel %vm422, %v417, %v404
      %v432 = vsel %vm422, %v419, %v406
      %v434 = vsel %vm422, %v421, %v408
      %s435 = sadd.s32 0, 1
      %s436 = smul.u32 %s435, 3
      %s437 = smul.addr %s436, 4
      %s438 = scalar_lea.vmem %s206, %s437
      %v439 = vld [vmem:[%s438] sm:$0xf]
      %v440 = vld [vmem:[%s438 + $0x4] sm:$0xf]
      %v441 = vld [vmem:[%s438 + $0x8] sm:$0x1]
      %v442 = vld [vmem:[%s438 + $0xc] sm:$0xf]
      %v443 = vld [vmem:[%s438 + $0x10] sm:$0xf]
      %v444 = vld [vmem:[%s438 + $0x14] sm:$0x1]
      %v445 = vld [vmem:[%s438 + $0x18] sm:$0xf]
      %v446 = vld [vmem:[%s438 + $0x1c] sm:$0xf]
      %v447 = vld [vmem:[%s438 + $0x20] sm:$0x1]
      %v448 = vld [vmem:[%s438 + $0x24] sm:$0xf]
      %v449 = vld [vmem:[%s438 + $0x28] sm:$0xf]
      %v450 = vld [vmem:[%s438 + $0x2c] sm:$0x1]
      %v451 = vld [vmem:[%s438 + $0x30] sm:$0xf]
      %v452 = vld [vmem:[%s438 + $0x34] sm:$0xf]
      %v453 = vld [vmem:[%s438 + $0x38] sm:$0x1]
      %v454 = vld [vmem:[%s438 + $0x3c] sm:$0xf]
      %v455 = vld [vmem:[%s438 + $0x40] sm:$0xf]
      %v456 = vld [vmem:[%s438 + $0x44] sm:$0x1]
      %v469 = vunpack.c.l.b16 %v439
      %v470 = vunpack.c.l.b16 %v440
      %v471 = vunpack.c.l.b16 %v442
      %v472 = vunpack.c.l.b16 %v443
      %v473 = vunpack.c.l.b16 %v445
      %v474 = vunpack.c.l.b16 %v446
      %v475 = vunpack.c.l.b16 %v448
      %v476 = vunpack.c.l.b16 %v449
      %v477 = vunpack.c.l.b16 %v451
      %v478 = vunpack.c.l.b16 %v452
      %v479 = vunpack.c.l.b16 %v454
      %v480 = vunpack.c.l.b16 %v455
      %v481 = vpack.c.b16 %v470, %v469
      %v482 = vpack.c.b16 %v472, %v471
      %v483 = vpack.c.b16 %v474, %v473
      %v484 = vpack.c.b16 %v476, %v475
      %v485 = vpack.c.b16 %v478, %v477
      %v486 = vpack.c.b16 %v480, %v479
      %v493 = vunpack.c.l.b16 %v441
      %v494 = vunpack.c.l.b16 %v444
      %v495 = vunpack.c.l.b16 %v447
      %v496 = vunpack.c.l.b16 %v450
      %v497 = vunpack.c.l.b16 %v453
      %v498 = vunpack.c.l.b16 %v456
      %v499 = vpack.c.b16 %v493, %v493
      %v500 = vpack.c.b16 %v494, %v494
      %v501 = vpack.c.b16 %v495, %v495
      %v502 = vpack.c.b16 %v496, %v496
      %v503 = vpack.c.b16 %v497, %v497
      %v504 = vpack.c.b16 %v498, %v498
      %v506 = vshrl.u32 %v481, 16
      %v508 = vshll.u32 %v481, 16
      %v510 = vrot.slane %v508, 1
      %v511 = vor.u32 %v506, %v510
      %v513 = vshll.u32 %v499, 16
      %v515 = vrot.slane %v513, 1
      %v516 = vsel %vm293, %v511, %v515
      %v518 = vshrl.u32 %v482, 16
      %v520 = vshll.u32 %v482, 16
      %v522 = vrot.slane %v520, 1
      %v523 = vor.u32 %v518, %v522
      %v525 = vshll.u32 %v500, 16
      %v527 = vrot.slane %v525, 1
      %v528 = vsel %vm293, %v523, %v527
      %v530 = vshrl.u32 %v483, 16
      %v532 = vshll.u32 %v483, 16
      %v534 = vrot.slane %v532, 1
      %v535 = vor.u32 %v530, %v534
      %v537 = vshll.u32 %v501, 16
      %v539 = vrot.slane %v537, 1
      %v540 = vsel %vm293, %v535, %v539
      %v542 = vshrl.u32 %v484, 16
      %v544 = vshll.u32 %v484, 16
      %v546 = vrot.slane %v544, 1
      %v547 = vor.u32 %v542, %v546
      %v549 = vshll.u32 %v502, 16
      %v551 = vrot.slane %v549, 1
      %v552 = vsel %vm293, %v547, %v551
      %v554 = vshrl.u32 %v485, 16
      %v556 = vshll.u32 %v485, 16
      %v558 = vrot.slane %v556, 1
      %v559 = vor.u32 %v554, %v558
      %v561 = vshll.u32 %v503, 16
      %v563 = vrot.slane %v561, 1
      %v564 = vsel %vm293, %v559, %v563
      %v566 = vshrl.u32 %v486, 16
      %v568 = vshll.u32 %v486, 16
      %v570 = vrot.slane %v568, 1
      %v571 = vor.u32 %v566, %v570
      %v573 = vshll.u32 %v504, 16
      %v575 = vrot.slane %v573, 1
      %v576 = vsel %vm293, %v571, %v575
      %577 = vrot.lane.b32.xlu0 %v516, 3
      %v578 = vpop.permute.xlu0 %577
      %579 = vrot.lane.b32.xlu0 %v528, 3
      %v580 = vpop.permute.xlu0 %579
      %581 = vrot.lane.b32.xlu0 %v540, 3
      %v582 = vpop.permute.xlu0 %581
      %583 = vrot.lane.b32.xlu0 %v552, 3
      %v584 = vpop.permute.xlu0 %583
      %585 = vrot.lane.b32.xlu0 %v564, 3
      %v586 = vpop.permute.xlu0 %585
      %587 = vrot.lane.b32.xlu0 %v576, 3
      %v588 = vpop.permute.xlu0 %587
      %v589 = vrot.slane %v481, 1
      %v590 = vrot.slane %v499, 1
      %v591 = vsel %vm378, %v589, %v590
      %v592 = vrot.slane %v482, 1
      %v593 = vrot.slane %v500, 1
      %v594 = vsel %vm378, %v592, %v593
      %v595 = vrot.slane %v483, 1
      %v596 = vrot.slane %v501, 1
      %v597 = vsel %vm378, %v595, %v596
      %v598 = vrot.slane %v484, 1
      %v599 = vrot.slane %v502, 1
      %v600 = vsel %vm378, %v598, %v599
      %v601 = vrot.slane %v485, 1
      %v602 = vrot.slane %v503, 1
      %v603 = vsel %vm378, %v601, %v602
      %v604 = vrot.slane %v486, 1
      %v605 = vrot.slane %v504, 1
      %v606 = vsel %vm378, %v604, %v605
      %607 = vrot.lane.b32.xlu0 %v591, 6
      %v608 = vpop.permute.xlu0 %607
      %609 = vrot.lane.b32.xlu0 %v594, 6
      %v610 = vpop.permute.xlu0 %609
      %611 = vrot.lane.b32.xlu0 %v597, 6
      %v612 = vpop.permute.xlu0 %611
      %613 = vrot.lane.b32.xlu0 %v600, 6
      %v614 = vpop.permute.xlu0 %613
      %615 = vrot.lane.b32.xlu0 %v603, 6
      %v616 = vpop.permute.xlu0 %615
      %617 = vrot.lane.b32.xlu0 %v606, 6
      %v618 = vpop.permute.xlu0 %617
      %v620 = vsel %vm409, %v481, %v578
      %v622 = vsel %vm409, %v482, %v580
      %v624 = vsel %vm409, %v483, %v582
      %v626 = vsel %vm409, %v484, %v584
      %v628 = vsel %vm409, %v485, %v586
      %v630 = vsel %vm409, %v486, %v588
      %v632 = vsel %vm422, %v620, %v608
      %v634 = vsel %vm422, %v622, %v610
      %v636 = vsel %vm422, %v624, %v612
      %v638 = vsel %vm422, %v626, %v614
      %v640 = vsel %vm422, %v628, %v616
      %v642 = vsel %vm422, %v630, %v618
      %s643 = sadd.s32 0, 2
      %s644 = smul.u32 %s643, 3
      %s645 = smul.addr %s644, 4
      %s646 = scalar_lea.vmem %s206, %s645
      %v647 = vld [vmem:[%s646] sm:$0xf]
      %v648 = vld [vmem:[%s646 + $0x4] sm:$0xf]
      %v649 = vld [vmem:[%s646 + $0x8] sm:$0x1]
      %v650 = vld [vmem:[%s646 + $0xc] sm:$0xf]
      %v651 = vld [vmem:[%s646 + $0x10] sm:$0xf]
      %v652 = vld [vmem:[%s646 + $0x14] sm:$0x1]
      %v653 = vld [vmem:[%s646 + $0x18] sm:$0xf]
      %v654 = vld [vmem:[%s646 + $0x1c] sm:$0xf]
      %v655 = vld [vmem:[%s646 + $0x20] sm:$0x1]
      %v656 = vld [vmem:[%s646 + $0x24] sm:$0xf]
      %v657 = vld [vmem:[%s646 + $0x28] sm:$0xf]
      %v658 = vld [vmem:[%s646 + $0x2c] sm:$0x1]
      %v659 = vld [vmem:[%s646 + $0x30] sm:$0xf]
      %v660 = vld [vmem:[%s646 + $0x34] sm:$0xf]
      %v661 = vld [vmem:[%s646 + $0x38] sm:$0x1]
      %v662 = vld [vmem:[%s646 + $0x3c] sm:$0xf]
      %v663 = vld [vmem:[%s646 + $0x40] sm:$0xf]
      %v664 = vld [vmem:[%s646 + $0x44] sm:$0x1]
      %v677 = vunpack.c.l.b16 %v647
      %v678 = vunpack.c.l.b16 %v648
      %v679 = vunpack.c.l.b16 %v650
      %v680 = vunpack.c.l.b16 %v651
      %v681 = vunpack.c.l.b16 %v653
      %v682 = vunpack.c.l.b16 %v654
      %v683 = vunpack.c.l.b16 %v656
      %v684 = vunpack.c.l.b16 %v657
      %v685 = vunpack.c.l.b16 %v659
      %v686 = vunpack.c.l.b16 %v660
      %v687 = vunpack.c.l.b16 %v662
      %v688 = vunpack.c.l.b16 %v663
      %v689 = vpack.c.b16 %v678, %v677
      %v690 = vpack.c.b16 %v680, %v679
      %v691 = vpack.c.b16 %v682, %v681
      %v692 = vpack.c.b16 %v684, %v683
      %v693 = vpack.c.b16 %v686, %v685
      %v694 = vpack.c.b16 %v688, %v687
      %v701 = vunpack.c.l.b16 %v649
      %v702 = vunpack.c.l.b16 %v652
      %v703 = vunpack.c.l.b16 %v655
      %v704 = vunpack.c.l.b16 %v658
      %v705 = vunpack.c.l.b16 %v661
      %v706 = vunpack.c.l.b16 %v664
      %v707 = vpack.c.b16 %v701, %v701
      %v708 = vpack.c.b16 %v702, %v702
      %v709 = vpack.c.b16 %v703, %v703
      %v710 = vpack.c.b16 %v704, %v704
      %v711 = vpack.c.b16 %v705, %v705
      %v712 = vpack.c.b16 %v706, %v706
      %v714 = vshrl.u32 %v689, 16
      %v716 = vshll.u32 %v689, 16
      %v718 = vrot.slane %v716, 1
      %v719 = vor.u32 %v714, %v718
      %v721 = vshll.u32 %v707, 16
      %v723 = vrot.slane %v721, 1
      %v724 = vsel %vm293, %v719, %v723
      %v726 = vshrl.u32 %v690, 16
      %v728 = vshll.u32 %v690, 16
      %v730 = vrot.slane %v728, 1
      %v731 = vor.u32 %v726, %v730
      %v733 = vshll.u32 %v708, 16
      %v735 = vrot.slane %v733, 1
      %v736 = vsel %vm293, %v731, %v735
      %v738 = vshrl.u32 %v691, 16
      %v740 = vshll.u32 %v691, 16
      %v742 = vrot.slane %v740, 1
      %v743 = vor.u32 %v738, %v742
      %v745 = vshll.u32 %v709, 16
      %v747 = vrot.slane %v745, 1
      %v748 = vsel %vm293, %v743, %v747
      %v750 = vshrl.u32 %v692, 16
      %v752 = vshll.u32 %v692, 16
      %v754 = vrot.slane %v752, 1
      %v755 = vor.u32 %v750, %v754
      %v757 = vshll.u32 %v710, 16
      %v759 = vrot.slane %v757, 1
      %v760 = vsel %vm293, %v755, %v759
      %v762 = vshrl.u32 %v693, 16
      %v764 = vshll.u32 %v693, 16
      %v766 = vrot.slane %v764, 1
      %v767 = vor.u32 %v762, %v766
      %v769 = vshll.u32 %v711, 16
      %v771 = vrot.slane %v769, 1
      %v772 = vsel %vm293, %v767, %v771
      %v774 = vshrl.u32 %v694, 16
      %v776 = vshll.u32 %v694, 16
      %v778 = vrot.slane %v776, 1
      %v779 = vor.u32 %v774, %v778
      %v781 = vshll.u32 %v712, 16
      %v783 = vrot.slane %v781, 1
      %v784 = vsel %vm293, %v779, %v783
      %785 = vrot.lane.b32.xlu0 %v724, 3
      %v786 = vpop.permute.xlu0 %785
      %787 = vrot.lane.b32.xlu0 %v736, 3
      %v788 = vpop.permute.xlu0 %787
      %789 = vrot.lane.b32.xlu0 %v748, 3
      %v790 = vpop.permute.xlu0 %789
      %791 = vrot.lane.b32.xlu0 %v760, 3
      %v792 = vpop.permute.xlu0 %791
      %793 = vrot.lane.b32.xlu0 %v772, 3
      %v794 = vpop.permute.xlu0 %793
      %795 = vrot.lane.b32.xlu0 %v784, 3
      %v796 = vpop.permute.xlu0 %795
      %v797 = vrot.slane %v689, 1
      %v798 = vrot.slane %v707, 1
      %v799 = vsel %vm378, %v797, %v798
      %v800 = vrot.slane %v690, 1
      %v801 = vrot.slane %v708, 1
      %v802 = vsel %vm378, %v800, %v801
      %v803 = vrot.slane %v691, 1
      %v804 = vrot.slane %v709, 1
      %v805 = vsel %vm378, %v803, %v804
      %v806 = vrot.slane %v692, 1
      %v807 = vrot.slane %v710, 1
      %v808 = vsel %vm378, %v806, %v807
      %v809 = vrot.slane %v693, 1
      %v810 = vrot.slane %v711, 1
      %v811 = vsel %vm378, %v809, %v810
      %v812 = vrot.slane %v694, 1
      %v813 = vrot.slane %v712, 1
      %v814 = vsel %vm378, %v812, %v813
      %815 = vrot.lane.b32.xlu0 %v799, 6
      %v816 = vpop.permute.xlu0 %815
      %817 = vrot.lane.b32.xlu0 %v802, 6
      %v818 = vpop.permute.xlu0 %817
      %819 = vrot.lane.b32.xlu0 %v805, 6
      %v820 = vpop.permute.xlu0 %819
      %821 = vrot.lane.b32.xlu0 %v808, 6
      %v822 = vpop.permute.xlu0 %821
      %823 = vrot.lane.b32.xlu0 %v811, 6
      %v824 = vpop.permute.xlu0 %823
      %825 = vrot.lane.b32.xlu0 %v814, 6
      %v826 = vpop.permute.xlu0 %825
      %v828 = vsel %vm409, %v689, %v786
      %v830 = vsel %vm409, %v690, %v788
      %v832 = vsel %vm409, %v691, %v790
      %v834 = vsel %vm409, %v692, %v792
      %v836 = vsel %vm409, %v693, %v794
      %v838 = vsel %vm409, %v694, %v796
      %v840 = vsel %vm422, %v828, %v816
      %v842 = vsel %vm422, %v830, %v818
      %v844 = vsel %vm422, %v832, %v820
      %v846 = vsel %vm422, %v834, %v822
      %v848 = vsel %vm422, %v836, %v824
      %v850 = vsel %vm422, %v838, %v826
      %857 = vrot.lane.b32.xlu0 %v632, 9
      %v858 = vpop.permute.xlu0 %857
      %859 = vrot.lane.b32.xlu0 %v634, 9
      %v860 = vpop.permute.xlu0 %859
      %861 = vrot.lane.b32.xlu0 %v636, 9
      %v862 = vpop.permute.xlu0 %861
      %863 = vrot.lane.b32.xlu0 %v638, 9
      %v864 = vpop.permute.xlu0 %863
      %865 = vrot.lane.b32.xlu0 %v640, 9
      %v866 = vpop.permute.xlu0 %865
      %867 = vrot.lane.b32.xlu0 %v642, 9
      %v868 = vpop.permute.xlu0 %867
      %875 = vrot.lane.b32.xlu0 %v840, 18
      %v876 = vpop.permute.xlu0 %875
      %877 = vrot.lane.b32.xlu0 %v842, 18
      %v878 = vpop.permute.xlu0 %877
      %879 = vrot.lane.b32.xlu0 %v844, 18
      %v880 = vpop.permute.xlu0 %879
      %881 = vrot.lane.b32.xlu0 %v846, 18
      %v882 = vpop.permute.xlu0 %881
      %883 = vrot.lane.b32.xlu0 %v848, 18
      %v884 = vpop.permute.xlu0 %883
      %885 = vrot.lane.b32.xlu0 %v850, 18
      %v886 = vpop.permute.xlu0 %885
      %vm887 = vcmask 72704
      %v889 = vsel %vm887, %v424, %v858
      %v891 = vsel %vm887, %v426, %v860
      %v893 = vsel %vm887, %v428, %v862
      %v895 = vsel %vm887, %v430, %v864
      %v897 = vsel %vm887, %v432, %v866
      %v899 = vsel %vm887, %v434, %v868
      %vm900 = vcmask 146432
      %v902 = vsel %vm900, %v889, %v876
      %v904 = vsel %vm900, %v891, %v878
      %v906 = vsel %vm900, %v893, %v880
      %v908 = vsel %vm900, %v895, %v882
      %v910 = vsel %vm900, %v897, %v884
      %v912 = vsel %vm900, %v899, %v886
      %v913 = vld [vmem:[%s210] sm:$0xf]
      %v914 = vld [vmem:[%s210 + $0x4] sm:$0xf]
      %v915 = vld [vmem:[%s210 + $0x8] sm:$0xf]
      %v916 = vld [vmem:[%s210 + $0xc] sm:$0x3]
      %v918 = vlaneseq
      %v919 = vshrl.u32 %v918, 7
      %v920 = vsub.s32 0, %v919
      %v921 = vrot.slane %v223, %v920
      %v927 = vunpack.c.l.b16 %v913
      %v928 = vunpack.c.l.b16 %v914
      %v929 = vunpack.c.l.b16 %v915
      %v930 = vunpack.c.l.b16 %v916
      %v931 = vpack.c.b16 %v928, %v927
      %v932 = vpack.c.b16 %v930, %v929
      %vm934 = vcmask 220160
      %v935 = vsel %vm934, %v902, 0
      %v937 = vsel %vm934, %v904, 0
      %v939 = vsel %vm934, %v906, 0
      %v941 = vsel %vm934, %v908, 0
      %v943 = vsel %vm934, %v910, 0
      %v945 = vsel %vm934, %v912, 0
      %vm947 = vcmask 1044480
      %vm948 = vcmask 1045504
      %v949 = vsel %vm947, 4294967295, 65535
      %v950 = vsel %vm948, %v949, 0
      %v952 = vand.u32 %v932, %v950
      %954 = vmatprep.subr.bf16.mxu0 0
      %955 = vmatpush1.bf16.msra.mxu0 0
      %956 = vmatprep.subr.bf16.mxu0 0
      %957 = vmatpush1.bf16.msra.mxu0 0
      %958 = vmatprep.subr.bf16.mxu0 0
      %959 = vmatpush1.bf16.msra.mxu0 0
      %960 = vmatprep.subr.bf16.mxu0 0
      %961 = vmatpush1.bf16.msra.mxu0 0
      %962 = vmatprep.subr.bf16.mxu0 0
      %963 = vmatpush1.bf16.msra.mxu0 0
      %964 = vmatprep.subr.bf16.mxu0 0
      %965 = vmatpush1.bf16.msra.mxu0 0
      %966 = vmatprep.subr.bf16.mxu0 0
      %967 = vmatpush1.bf16.msra.mxu0 %v952
      %968 = vmatprep.subr.bf16.mxu0 0
      %969 = vmatpush1.bf16.msra.mxu0 %v931
      %970 = vmatprep.subr.bf16.mxu0 0
      %971 = vmatpush2.bf16.msra.mxu0 0
      %972 = vmatprep.subr.bf16.mxu0 0
      %973 = vmatpush2.bf16.msra.mxu0 0
      %974 = vmatprep.subr.bf16.mxu0 0
      %975 = vmatpush2.bf16.msra.mxu0 0
      %976 = vmatprep.subr.bf16.mxu0 0
      %977 = vmatpush2.bf16.msra.mxu0 0
      %978 = vmatprep.subr.bf16.mxu0 0
      %979 = vmatpush2.bf16.msra.mxu0 0
      %980 = vmatprep.subr.bf16.mxu0 0
      %981 = vmatpush2.bf16.msra.mxu0 0
      %982 = vmatprep.subr.bf16.mxu0 0
      %983 = vmatpush2.bf16.msra.mxu0 0
      %984 = vmatprep.subr.bf16.mxu0 0
      %985 = vmatpush2.bf16.msra.mxu0 0
      %986 = vmatprep.mubr.bf16.mxu0 0
      %987 = vmatmul.mubr.bf16.gmra.mxu0 %v935
      %v988 = vpop.f32.mrf.mxu0
      %v989 = vadd.f32 %v921, %v988
      %v990 = vpop.f32.mrf.mxu0
      %v991 = vpop.f32.mrf.mxu0
      %v992 = vadd.f32 %v921, %v991
      %v993 = vpop.f32.mrf.mxu0
      %994 = vmatprep.mubr.bf16.mxu0 0
      %995 = vmatmul.mubr.bf16.gmra.mxu0 %v937
      %v996 = vpop.f32.mrf.mxu0
      %v997 = vadd.f32 %v921, %v996
      %v998 = vpop.f32.mrf.mxu0
      %v999 = vpop.f32.mrf.mxu0
      %v1000 = vadd.f32 %v921, %v999
      %v1001 = vpop.f32.mrf.mxu0
      %1002 = vmatprep.mubr.bf16.mxu0 0
      %1003 = vmatmul.mubr.bf16.gmra.mxu0 %v939
      %v1004 = vpop.f32.mrf.mxu0
      %v1005 = vadd.f32 %v921, %v1004
      %v1006 = vpop.f32.mrf.mxu0
      %v1007 = vpop.f32.mrf.mxu0
      %v1008 = vadd.f32 %v921, %v1007
      %v1009 = vpop.f32.mrf.mxu0
      %1010 = vmatprep.mubr.bf16.mxu0 0
      %1011 = vmatmul.mubr.bf16.gmra.mxu0 %v941
      %v1012 = vpop.f32.mrf.mxu0
      %v1013 = vadd.f32 %v921, %v1012
      %v1014 = vpop.f32.mrf.mxu0
      %v1015 = vpop.f32.mrf.mxu0
      %v1016 = vadd.f32 %v921, %v1015
      %v1017 = vpop.f32.mrf.mxu0
      %1018 = vmatprep.mubr.bf16.mxu0 0
      %1019 = vmatmul.mubr.bf16.gmra.mxu0 %v943
      %v1020 = vpop.f32.mrf.mxu0
      %v1021 = vadd.f32 %v921, %v1020
      %v1022 = vpop.f32.mrf.mxu0
      %v1023 = vpop.f32.mrf.mxu0
      %v1024 = vadd.f32 %v921, %v1023
      %v1025 = vpop.f32.mrf.mxu0
      %1026 = vmatprep.mubr.bf16.mxu0 0
      %1027 = vmatmul.mubr.bf16.gmra.mxu0 %v945
      %v1028 = vpop.f32.mrf.mxu0
      %v1029 = vadd.f32 %v921, %v1028
      %v1030 = vpop.f32.mrf.mxu0
      %v1031 = vpop.f32.mrf.mxu0
      %v1032 = vadd.f32 %v921, %v1031
      %v1033 = vpop.f32.mrf.mxu0
      %1034 = vdwg.mxu0
      %v1035 = vmax.f32 %v989, 0.0
      %v1036 = vmax.f32 %v992, 0.0
      %v1037 = vmax.f32 %v997, 0.0
      %v1038 = vmax.f32 %v1000, 0.0
      %v1039 = vmax.f32 %v1005, 0.0
      %v1040 = vmax.f32 %v1008, 0.0
      %v1041 = vmax.f32 %v1013, 0.0
      %v1042 = vmax.f32 %v1016, 0.0
      %v1043 = vmax.f32 %v1021, 0.0
      %v1044 = vmax.f32 %v1024, 0.0
      %v1045 = vmax.f32 %v1029, 0.0
      %v1046 = vmax.f32 %v1032, 0.0
      %v1047 = vpack.c.bf16 %v1036, %v1035
      %v1048 = vpack.c.bf16 %v1038, %v1037
      %v1049 = vpack.c.bf16 %v1040, %v1039
      %v1050 = vpack.c.bf16 %v1042, %v1041
      %v1051 = vpack.c.bf16 %v1044, %v1043
      %v1052 = vpack.c.bf16 %v1046, %v1045
      %v1059 = vunpack.c.l.b16 %v1047
      %v1060 = vunpack.c.h.b16 %v1047
      %v1061 = vunpack.c.l.b16 %v1048
      %v1062 = vunpack.c.h.b16 %v1048
      %v1063 = vunpack.c.l.b16 %v1049
      %v1064 = vunpack.c.h.b16 %v1049
      %v1065 = vunpack.c.l.b16 %v1050
      %v1066 = vunpack.c.h.b16 %v1050
      %v1067 = vunpack.c.l.b16 %v1051
      %v1068 = vunpack.c.h.b16 %v1051
      %v1069 = vunpack.c.l.b16 %v1052
      %v1070 = vunpack.c.h.b16 %v1052
      %v1071 = vpack.c.b16 %v1059, %v1059
      %v1072 = vpack.c.b16 %v1060, %v1060
      %v1073 = vpack.c.b16 %v1061, %v1061
      %v1074 = vpack.c.b16 %v1062, %v1062
      %v1075 = vpack.c.b16 %v1063, %v1063
      %v1076 = vpack.c.b16 %v1064, %v1064
      %v1077 = vpack.c.b16 %v1065, %v1065
      %v1078 = vpack.c.b16 %v1066, %v1066
      %v1079 = vpack.c.b16 %v1067, %v1067
      %v1080 = vpack.c.b16 %v1068, %v1068
      %v1081 = vpack.c.b16 %v1069, %v1069
      %v1082 = vpack.c.b16 %v1070, %v1070
      %s1095 = smul.u32 0, 2
      %s1096 = smul.addr %s1095, 4
      %s1097 = scalar_lea.vmem %s221, %s1096
      %vm1098 = vcmask 519168
      %1099 = vst.msk [vmem:[%s1097] sm:$0xf] %vm1098, %v1071
      %1100 = vst.msk [vmem:[%s1097 + $0x4] sm:$0xf] %vm1098, %v1072
      %1101 = vst.msk [vmem:[%s1097 + $0x8] sm:$0xf] %vm1098, %v1073
      %1102 = vst.msk [vmem:[%s1097 + $0xc] sm:$0xf] %vm1098, %v1074
      %1103 = vst.msk [vmem:[%s1097 + $0x10] sm:$0xf] %vm1098, %v1075
      %1104 = vst.msk [vmem:[%s1097 + $0x14] sm:$0xf] %vm1098, %v1076
      %1105 = vst.msk [vmem:[%s1097 + $0x18] sm:$0xf] %vm1098, %v1077
      %1106 = vst.msk [vmem:[%s1097 + $0x1c] sm:$0xf] %vm1098, %v1078
      %1107 = vst.msk [vmem:[%s1097 + $0x20] sm:$0xf] %vm1098, %v1079
      %1108 = vst.msk [vmem:[%s1097 + $0x24] sm:$0xf] %vm1098, %v1080
      %1109 = vst.msk [vmem:[%s1097 + $0x28] sm:$0xf] %vm1098, %v1081
      %1110 = vst.msk [vmem:[%s1097 + $0x2c] sm:$0xf] %vm1098, %v1082
      %p1111 = scmp.lt.s32.totalorder %s18, 1
      %s1112 = scalar_select %p1111, %s18, 1
      %p1113 = scmp.lt.s32.totalorder %s19, 0
      %s1114 = scalar_select %p1113, %s19, 0
      %s1115 = smul.addr %s1112, 12
      %s1116 = sadd.s32 %s1114, %s1115
      %s1117 = smul.addr %s1116, 4
      %s1118 = scalar_lea.vmem %s3, %s1117
      // Predicated region
      $region33: #{conv3x3_relu.1} parent=31 // pred_check
        %p1119 = pneg %p124
      $region34: #{conv3x3_relu.1} parent=31 // pred_check_branch
        %1121 = sbr.rel (%p1119) target = $region36
      $region35: #{conv3x3_relu.1} parent=31 // pred_region
        _
      $region36: #{conv3x3_relu.1} parent=31 // pred_fallthru
        _
    $region32: #{conv3x3_relu.1} parent=5 // pred_fallthru
      _
    %p1122 = scmp.le.s32.totalorder 2, %s9
    // Predicated region
    $region37: #{conv3x3_relu.1} parent=5 // pred_check
      %p1123 = pneg %p1122
    $region38: #{conv3x3_relu.1} parent=5 // pred_check_branch
      %1125 = sbr.rel (%p1123) target = $region40
    $region39: #{conv3x3_relu.1} parent=5 // pred_region
      %s1126 = ssub.s32 %s9, 2
      // Predicated region
      $region41: #{conv3x3_relu.1} parent=39 // pred_check
        %p1127 = pneg %p130
      $region42: #{conv3x3_relu.1} parent=39 // pred_check_branch
        %1129 = sbr.rel (%p1127) target = $region44
      $region43: #{conv3x3_relu.1} parent=39 // pred_region
        %p1130 = scmp.lt.s32.totalorder %s20, 1
        %s1131 = scalar_select %p1130, %s20, 1
        %p1132 = scmp.lt.s32.totalorder %s21, 0
        %s1133 = scalar_select %p1132, %s21, 0
        %s1134 = smul.addr %s1131, 12
        %s1135 = sadd.s32 %s1133, %s1134
        %s1136 = smul.addr %s1135, 4
        %s1137 = scalar_lea.vmem %s3, %s1136
      $region44: #{conv3x3_relu.1} parent=39 // pred_fallthru
        _
    $region40: #{conv3x3_relu.1} parent=5 // pred_fallthru
      _
  $region6: #{conv3x3_relu.1} parent=0 // loop_footer
    %s13 = sadd.s32 1, %s9
  $region7: #{conv3x3_relu.1} parent=0 // loop_footer_branch
    %8 = sbr.rel target = $region3
  $region8: #{conv3x3_relu.1} parent=0 // loop_exit
    _

</llo_original>
